<compile_context>
chip_gen: v5e
topology: v5e:2x2
jax: 0.10.0
libtpu: 0.0.40
codegen_flags: <defaults>
</compile_context>

<pallas_src>
import jax
import jax.numpy as jnp
from jax.experimental import pallas as pl
from jax.experimental.pallas import tpu as pltpu


def _mask_kernel(x_ref, w_ref, o_ref):
    # x_ref: (rows_tile, lane_tile)   w_ref: (1, lane_tile)   o_ref: like x_ref
    # Broadcast multiply; cast for robustness if dtypes ever differ/promote.
    o_ref[...] = (x_ref[...] * w_ref[...]).astype(o_ref.dtype)


def mask_forward(
    x: jax.Array,
    weights: jax.Array,
    use_sigmoid: bool = False,
    *,
    max_tile_bytes: int = 4 << 20,   # ~4 MiB of x per grid step
    max_lane_tile: int = 4096,       # lanes per grid step (multiple of 128)
) -> jax.Array:
    """Pallas implementation of Mask.forward.

    x:       [B, D1, D2]
    weights: [D1, D2]
    returns: [B, D1, D2], same dtype as x
    """
    B, D1, D2 = x.shape
    assert weights.shape == (D1, D2)

    # Hoist the (optional) sigmoid out of the kernel: one small XLA op.
    if use_sigmoid:
        w = jax.nn.sigmoid(weights.astype(jnp.float32)).astype(x.dtype)
    else:
        w = weights.astype(x.dtype)

    # Lane-dense 2D layout: rows = batch, lanes = D1*D2.
    L = D1 * D2
    x2 = x.reshape(B, L)
    w2 = w.reshape(1, L)

    itemsize = jnp.dtype(x.dtype).itemsize

    # --- lane tiling: full extent if it fits, else a large multiple of 128 ---
    if L <= max_lane_tile:
        lane_tile = L                       # full extent -> always legal
    else:
        lane_tile = max(128, (max_lane_tile // 128) * 128)

    # --- row tiling: fuse as many rows per step as the tile budget allows ---
    row_bytes = lane_tile * itemsize
    rows_tile = max(1, max_tile_bytes // row_bytes)
    if rows_tile >= B:
        rows_tile = B                       # whole row axis in one block
    else:
        rows_tile = max(8, (rows_tile // 8) * 8)   # keep sublane-aligned

    grid = (pl.cdiv(B, rows_tile), pl.cdiv(L, lane_tile))

    # VMEM budget: double-buffered x + out tiles, plus weights block, + margin.
    x_tile_bytes = rows_tile * lane_tile * itemsize
    w_tile_bytes = lane_tile * itemsize
    vmem_limit = 2 * (2 * x_tile_bytes) + 2 * w_tile_bytes + (2 << 20)
    vmem_limit = int(min(max(vmem_limit, 8 << 20), 48 << 20))

    cost = pl.CostEstimate(
        flops=B * L,
        transcendentals=0,
        bytes_accessed=2 * B * L * itemsize + L * itemsize,
    )

    out2 = pl.pallas_call(
        _mask_kernel,
        out_shape=jax.ShapeDtypeStruct((B, L), x.dtype),
        grid_spec=pltpu.PrefetchScalarGridSpec(
            num_scalar_prefetch=0,
            grid=grid,
            in_specs=[
                pl.BlockSpec((rows_tile, lane_tile), lambda r, c: (r, c)),
                pl.BlockSpec((1, lane_tile), lambda r, c: (0, c)),
            ],
            out_specs=pl.BlockSpec((rows_tile, lane_tile), lambda r, c: (r, c)),
        ),
        compiler_params=pltpu.CompilerParams(
            dimension_semantics=("parallel", "parallel"),
            vmem_limit_bytes=vmem_limit,
        ),
        cost_estimate=cost,
    )(x2, w2)

    return out2.reshape(B, D1, D2)


if __name__ == "__main__":
    key = jax.random.PRNGKey(0)

    B, D = 2, 16  # small shapes; D = input_dims of the Mask module
    x = jax.random.normal(key, (B, D, D), dtype=jnp.float32)

    # Deterministic parameter init matching Mask(input_dims=D, initialization='ones')
    weights = jnp.ones((D, D), dtype=jnp.float32)

    # use_sigmoid=False path (single full-block invocation for this size)
    out = jax.block_until_ready(mask_forward(x, weights, use_sigmoid=False))
    expected = x * weights[None, :, :]
    assert jnp.allclose(out, expected, atol=1e-6), "mask (no sigmoid) mismatch"

    # use_sigmoid=True path (sigmoid hoisted into the wrapper)
    out_sig = jax.block_until_ready(mask_forward(x, weights, use_sigmoid=True))
    expected_sig = x * jax.nn.sigmoid(weights)[None, :, :]
    assert jnp.allclose(out_sig, expected_sig, atol=1e-6), "mask (sigmoid) mismatch"

    # Extra check exercising the multi-step (rows x lanes) grid path with tiny
    # forced tile budgets, to validate the tiling logic itself.
    B2, D2 = 32, 32
    x_big = jax.random.normal(jax.random.PRNGKey(1), (B2, D2, D2), dtype=jnp.float32)
    w_big = jax.random.normal(jax.random.PRNGKey(2), (D2, D2), dtype=jnp.float32)
    out_big = jax.block_until_ready(
        mask_forward(x_big, w_big, use_sigmoid=True,
                     max_tile_bytes=8 * 1024, max_lane_tile=256)
    )
    expected_big = x_big * jax.nn.sigmoid(w_big)[None, :, :]
    assert jnp.allclose(out_big, expected_big, atol=1e-5), "mask (tiled) mismatch"

    print("KERNEL_OK")
</pallas_src>

<mosaic_0001>
module attributes {stable_mosaic.version = 11 : i64} {
  func.func @_mask_kernel(%arg0: i32, %arg1: i32, %arg2: memref<2x256xf32, #tpu.memory_space<vmem>>, %arg3: memref<1x256xf32, #tpu.memory_space<vmem>>, %arg4: memref<2x256xf32, #tpu.memory_space<vmem>>) attributes {dimension_semantics = [#tpu.dimension_semantics<parallel>, #tpu.dimension_semantics<parallel>], iteration_bounds = array<i64: 1, 1>, scalar_prefetch = 0 : i64, scratch_operands = 0 : i64, tpu.core_type = #tpu.core_type<tc>, window_params = [{transform_indices = @transform_0, window_bounds = array<i64: 2, 256>}, {transform_indices = @transform_1, window_bounds = array<i64: 1, 256>}, {transform_indices = @transform_2, window_bounds = array<i64: 2, 256>}]} {
    %c0 = arith.constant 0 : index
    %c0_0 = arith.constant 0 : index
    %0 = vector.load %arg2[%c0, %c0_0] : memref<2x256xf32, #tpu.memory_space<vmem>>, vector<2x256xf32>
    %c0_1 = arith.constant 0 : index
    %c0_2 = arith.constant 0 : index
    %1 = vector.load %arg3[%c0_1, %c0_2] : memref<1x256xf32, #tpu.memory_space<vmem>>, vector<1x256xf32>
    %2 = vector.broadcast %1 : vector<1x256xf32> to vector<2x256xf32>
    %3 = arith.mulf %0, %2 : vector<2x256xf32>
    %c0_3 = arith.constant 0 : index
    %c0_4 = arith.constant 0 : index
    %4 = vector.load %arg4[%c0_3, %c0_4] : memref<2x256xf32, #tpu.memory_space<vmem>>, vector<2x256xf32>
    tpu.vector_store %arg4[%c0_3, %c0_4], %3 {strides = array<i32>} : memref<2x256xf32, #tpu.memory_space<vmem>>, vector<2x256xf32>,
    return
  }
  func.func @transform_0(%arg0: i32, %arg1: i32) -> (i32, i32) {
    %c0_i32 = arith.constant 0 : i32
    return %arg0, %arg1 : i32, i32
  }
  func.func @transform_1(%arg0: i32, %arg1: i32) -> (i32, i32) {
    %c0_i32 = arith.constant 0 : i32
    %c0_i32_0 = arith.constant 0 : i32
    return %c0_i32, %arg1 : i32, i32
  }
  func.func @transform_2(%arg0: i32, %arg1: i32) -> (i32, i32) {
    %c0_i32 = arith.constant 0 : i32
    return %arg0, %arg1 : i32, i32
  }
}

</mosaic_0001>

<llo_original>
// kernel: tpu_custom_call.1
$region0: #{tpu_custom_call.1}
  #allocation0 [shape = 'u32[]', space=smem, size = 0x4, offset = 0x4, fixed_abs, tag = 'smem constant byte address 0x4 - core index']
  #allocation1 [shape = 'u32[72,128]{1,0:T(1,128)}', space=vmem, size = 0x9000, scoped, tag = 'internal scratch']
  %s0 = inlined_call_operand.hbm [shape: f32[2,256], index: 0, kind: input, shape index: {}]
  %s1 = inlined_call_operand.hbm [shape: f32[1,256], index: 1, kind: input, shape index: {}]
  %s2 = inlined_call_operand.hbm [shape: f32[2,256], index: 2, kind: output, shape index: {}]
  %s3 = sld [smem:[#allocation0]]
  $region26: #{tpu_custom_call.1} parent=0
    _
  %s5 = ssub.s32 1, %s3
  %s6 = scalar_select 0, %s5, %s3
  $region1: #{tpu_custom_call.1} parent=0
    #allocation2 [shape = 'u8[2048]{0}', space=vmem, size = 0x800, scoped, tag = 'input window, operand 0, single buffered']
    #allocation3 [shape = 's32[1]{0}', space=sflag, size = 0x4, scoped, tag = 'scoped memory for tpu_custom_call.1']
    #allocation4 [shape = 's32[1]{0}', space=sflag, size = 0x4, scoped, tag = 'scoped memory for tpu_custom_call.1']
    #allocation5 [shape = 'u8[1024]{0}', space=vmem, size = 0x400, scoped, tag = 'input window, operand 1, single buffered']
    #allocation6 [shape = 's32[1]{0}', space=sflag, size = 0x4, scoped, tag = 'scoped memory for tpu_custom_call.1']
    #allocation7 [shape = 'u8[2048]{0}', space=vmem, size = 0x800, scoped, tag = 'output window, operand 0, single buffered']
    %7 = vsyncpa [#allocation3], 0
    %8 = vsyncpa [#allocation6], 0
    %9 = vsyncpa [#allocation4], 0
    // Predicated region
    $region2: #{tpu_custom_call.1} parent=1 // pred_check
      _
    $region3: #{tpu_custom_call.1} parent=1 // pred_check_branch
      %11 = sbr.rel (0) target = $region5
    $region4: #{tpu_custom_call.1} parent=1 // pred_region
      %13 = vsyncadd [#allocation3], 0
      %s15 = sshll.u32 %s0, 4
      %s16 = int_to_ptr.hbm [resolvable:$true] %s15
      %s17 = sshll.u32 [#allocation2], 4
      %s18 = int_to_ptr.vmem [resolvable:$true] %s17
      %20 = dma.hbm_to_vmem [thread:$0]  %s16, 64, %s18, [#allocation3]
    $region5: #{tpu_custom_call.1} parent=1 // pred_fallthru
      _
    // Predicated region
    $region6: #{tpu_custom_call.1} parent=1 // pred_check
      _
    $region7: #{tpu_custom_call.1} parent=1 // pred_check_branch
      %22 = sbr.rel (0) target = $region9
    $region8: #{tpu_custom_call.1} parent=1 // pred_region
      %24 = vsyncadd [#allocation6], 0
      %s26 = sshll.u32 %s1, 4
      %s27 = int_to_ptr.hbm [resolvable:$true] %s26
      %s28 = sshll.u32 [#allocation5], 4
      %s29 = int_to_ptr.vmem [resolvable:$true] %s28
      %31 = dma.hbm_to_vmem [thread:$0]  %s27, 32, %s29, [#allocation6]
    $region9: #{tpu_custom_call.1} parent=1 // pred_fallthru
      _
    // Predicated region
    $region10: #{tpu_custom_call.1} parent=1 // pred_check
      _
    $region11: #{tpu_custom_call.1} parent=1 // pred_check_branch
      %33 = sbr.rel (0) target = $region13
    $region12: #{tpu_custom_call.1} parent=1 // pred_region
      %35 = dma.done [#allocation3], 64
    $region13: #{tpu_custom_call.1} parent=1 // pred_fallthru
      _
    // Predicated region
    $region14: #{tpu_custom_call.1} parent=1 // pred_check
      _
    $region15: #{tpu_custom_call.1} parent=1 // pred_check_branch
      %37 = sbr.rel (0) target = $region17
    $region16: #{tpu_custom_call.1} parent=1 // pred_region
      %39 = dma.done [#allocation6], 32
    $region17: #{tpu_custom_call.1} parent=1 // pred_fallthru
      _
    %v40 = vld [vmem:[#allocation2] sm:$0xf]
    %v41 = vld [vmem:[#allocation5] sm:$0x3]
    %v43 = vperm.slane %v41, 0
    %v44 = vperm.slane %v41, 1
    %v45 = vrot.slane %v44, 6
    %vm46 = vcmask 1041408
    %v47 = vsel %vm46, %v43, %v45
    %v49 = vmul.f32 %v40, %v47
    %50 = vst [vmem:[#allocation7] sm:$0xf] %v49
    // Predicated region
    $region18: #{tpu_custom_call.1} parent=1 // pred_check
      _
    $region19: #{tpu_custom_call.1} parent=1 // pred_check_branch
      %52 = sbr.rel (0) target = $region21
    $region20: #{tpu_custom_call.1} parent=1 // pred_region
      %54 = vsyncadd [#allocation4], 0
      %s56 = sshll.u32 [#allocation7], 4
      %s57 = int_to_ptr.vmem [resolvable:$true] %s56
      %s58 = sshll.u32 %s2, 4
      %s59 = int_to_ptr.hbm [resolvable:$true] %s58
      %61 = dma.vmem_to_hbm [thread:$0]  %s57, 64, %s59, [#allocation4]
    $region21: #{tpu_custom_call.1} parent=1 // pred_fallthru
      _
    // Predicated region
    $region22: #{tpu_custom_call.1} parent=1 // pred_check
      _
    $region23: #{tpu_custom_call.1} parent=1 // pred_check_branch
      %63 = sbr.rel (0) target = $region25
    $region24: #{tpu_custom_call.1} parent=1 // pred_region
      %65 = dma.done [#allocation4], 64
    $region25: #{tpu_custom_call.1} parent=1 // pred_fallthru
      _
    %66 = vsyncpa [#allocation3], 1
    %67 = vsyncpa [#allocation6], 1
    %68 = vsyncpa [#allocation4], 1

</llo_original>
